<compile_context>
chip_gen: v7x
topology: tpu7x:2x2x1
jax: 0.10.0
libtpu: 0.0.40
codegen_flags: <defaults>
</compile_context>

<pallas_src>
import jax
import jax.numpy as jnp
from jax import lax
from jax.experimental import pallas as pl
from jax.experimental.pallas import tpu as pltpu

_LANE = 128
_SUBLANE = 8


def _round_up(n, m):
    return ((n + m - 1) // m) * m


# ---------------------------------------------------------------------------
# Kernel: one grid step == one GRU timestep. Weights/biases are resident in
# VMEM (constant index_map), hidden state is carried in a VMEM scratch.
# ---------------------------------------------------------------------------
def _gru_kernel(h0_ref, x_ref,
                wx_ref, whzr_ref, wuh_ref, wxh_ref,
                bzr_ref, bu_ref, by_ref,
                ht_ref, yt_ref,
                h_scr):
    t = pl.program_id(0)
    Hp = h_scr.shape[1]

    @pl.when(t == 0)
    def _():
        h_scr[...] = h0_ref[...].astype(jnp.float32)

    cdt = wx_ref.dtype                   # matmul operand dtype (f32 or bf16)
    h = h_scr[...]                       # (Bp, Hp) f32 recurrent state
    x = x_ref[0]                         # (Bp, Dinp), already compute dtype

    # Fused input-path matmul: [z | r | u] pre-activations from x.
    xg = jnp.dot(x, wx_ref[...], preferred_element_type=jnp.float32)  # (Bp, 3Hp)
    # Fused hidden-path matmul for the z and r gates.
    hg = jnp.dot(h.astype(cdt), whzr_ref[...],
                 preferred_element_type=jnp.float32)                  # (Bp, 2Hp)

    zr = jax.nn.sigmoid(hg + xg[:, :2 * Hp] + bzr_ref[...])
    zt = zr[:, :Hp]
    rt = zr[:, Hp:]

    # Candidate state: h-path must stay separate (depends on rt * h).
    cand = jnp.tanh(
        jnp.dot((rt * h).astype(cdt), wuh_ref[...],
                preferred_element_type=jnp.float32)
        + xg[:, 2 * Hp:] + bu_ref[...])

    ht = (1.0 - zt) * h + zt * cand
    yt = jnp.dot(ht.astype(cdt), wxh_ref[...],
                 preferred_element_type=jnp.float32) + by_ref[...]

    h_scr[...] = ht
    ht_ref[0] = ht.astype(ht_ref.dtype)
    yt_ref[0] = yt.astype(yt_ref.dtype)


# ---------------------------------------------------------------------------
# Host-side weight fusion + lane padding.
# ---------------------------------------------------------------------------
def _pack_params(p, Hp, Dinp, Doutp, compute_dtype):
    def padw(w, rows, cols):
        return jnp.pad(w, ((0, rows - w.shape[0]), (0, cols - w.shape[1])))

    def padb(b, cols):
        return jnp.pad(b, ((0, 0), (0, cols - b.shape[1])))

    wx = jnp.concatenate(
        [padw(p["wzx"], Dinp, Hp), padw(p["wrx"], Dinp, Hp),
         padw(p["wux"], Dinp, Hp)], axis=1).astype(compute_dtype)
    whzr = jnp.concatenate(
        [padw(p["wzh"], Hp, Hp), padw(p["wrh"], Hp, Hp)],
        axis=1).astype(compute_dtype)
    wuh = padw(p["wuh"], Hp, Hp).astype(compute_dtype)
    wxh = padw(p["wxh"], Hp, Doutp).astype(compute_dtype)

    # Paired biases pre-added in the wrapper (half the VPU bias adds).
    bzr = jnp.concatenate(
        [padb(p["bzh"] + p["bzx"], Hp), padb(p["brh"] + p["brx"], Hp)],
        axis=1).astype(jnp.float32)
    bu = padb(p["buh"] + p["bux"], Hp).astype(jnp.float32)
    by = padb(p["bxh"], Doutp).astype(jnp.float32)
    return dict(wx=wx, whzr=whzr, wuh=wuh, wxh=wxh, bzr=bzr, bu=bu, by=by)


# ---------------------------------------------------------------------------
# Sequence wrapper: all T steps in one pallas_call, weights resident in VMEM.
# ---------------------------------------------------------------------------
def gru_sequence_pallas(ht_1, x_seq, params, *, compute_dtype=jnp.float32):
    B, H = ht_1.shape
    T, B2, Din = x_seq.shape
    assert B2 == B
    Dout = params["wxh"].shape[1]

    Bp = _round_up(B, _SUBLANE)
    Hp = _round_up(H, _LANE)
    Dinp = _round_up(Din, _LANE)
    Doutp = _round_up(Dout, _LANE)

    fused = _pack_params(params, Hp, Dinp, Doutp, compute_dtype)

    h0 = jnp.pad(ht_1.astype(jnp.float32), ((0, Bp - B), (0, Hp - H)))
    xs = jnp.pad(x_seq, ((0, 0), (0, Bp - B), (0, Dinp - Din))).astype(compute_dtype)

    const2 = lambda t: (0, 0)          # weights/biases: resident, DMA'd once
    step3 = lambda t: (t, 0, 0)        # per-timestep blocks

    in_specs = [
        pl.BlockSpec((Bp, Hp), const2),            # h0
        pl.BlockSpec((1, Bp, Dinp), step3),        # x_t
        pl.BlockSpec((Dinp, 3 * Hp), const2),      # fused [wzx|wrx|wux]
        pl.BlockSpec((Hp, 2 * Hp), const2),        # fused [wzh|wrh]
        pl.BlockSpec((Hp, Hp), const2),            # wuh
        pl.BlockSpec((Hp, Doutp), const2),         # wxh
        pl.BlockSpec((1, 2 * Hp), const2),         # fused z/r bias
        pl.BlockSpec((1, Hp), const2),             # fused u bias
        pl.BlockSpec((1, Doutp), const2),          # output bias
    ]
    out_specs = (
        pl.BlockSpec((1, Bp, Hp), step3),
        pl.BlockSpec((1, Bp, Doutp), step3),
    )

    ht_seq, yt_seq = pl.pallas_call(
        _gru_kernel,
        grid=(T,),
        in_specs=in_specs,
        out_specs=out_specs,
        out_shape=(
            jax.ShapeDtypeStruct((T, Bp, Hp), jnp.float32),
            jax.ShapeDtypeStruct((T, Bp, Doutp), jnp.float32),
        ),
        scratch_shapes=[pltpu.VMEM((Bp, Hp), jnp.float32)],
        compiler_params=pltpu.CompilerParams(
            # Time axis is a true recurrence -> must be "arbitrary".
            dimension_semantics=("arbitrary",),
        ),
    )(h0, xs, fused["wx"], fused["whzr"], fused["wuh"], fused["wxh"],
      fused["bzr"], fused["bu"], fused["by"])

    return ht_seq[:, :B, :H], yt_seq[:, :B, :Dout]


def gru_cell_pallas(ht_1, xt, params, *, compute_dtype=jnp.float32):
    """Single-step GRUCell.forward semantics (T=1 sequence)."""
    ht_seq, yt_seq = gru_sequence_pallas(ht_1, xt[None], params,
                                         compute_dtype=compute_dtype)
    return ht_seq[0], yt_seq[0]


# ---------------------------------------------------------------------------
# Params + pure-JAX reference (matches the PyTorch forward exactly).
# ---------------------------------------------------------------------------
def init_params(key, h_dim, inp_x_dim, out_x_dim):
    """Weights stored as (in, out), biases as (1, out)."""
    def dense(k, din, dout):
        kw, kb = jax.random.split(k)
        bound = 1.0 / jnp.sqrt(din)
        w = jax.random.uniform(kw, (din, dout), jnp.float32, -bound, bound)
        b = jax.random.uniform(kb, (1, dout), jnp.float32, -bound, bound)
        return w, b

    keys = jax.random.split(key, 7)
    p = {}
    p["wzh"], p["bzh"] = dense(keys[0], h_dim, h_dim)
    p["wzx"], p["bzx"] = dense(keys[1], inp_x_dim, h_dim)
    p["wrh"], p["brh"] = dense(keys[2], h_dim, h_dim)
    p["wrx"], p["brx"] = dense(keys[3], inp_x_dim, h_dim)
    p["wuh"], p["buh"] = dense(keys[4], h_dim, h_dim)
    p["wux"], p["bux"] = dense(keys[5], inp_x_dim, h_dim)
    p["wxh"], p["bxh"] = dense(keys[6], h_dim, out_x_dim)
    return p


def gru_cell_ref(ht_1, xt, p):
    zt = jax.nn.sigmoid(ht_1 @ p["wzh"] + p["bzh"] + xt @ p["wzx"] + p["bzx"])
    rt = jax.nn.sigmoid(ht_1 @ p["wrh"] + p["brh"] + xt @ p["wrx"] + p["brx"])
    ht_ = jnp.tanh((rt * ht_1) @ p["wuh"] + p["buh"] + xt @ p["wux"] + p["bux"])
    ht = (1.0 - zt) * ht_1 + zt * ht_
    yt = ht @ p["wxh"] + p["bxh"]
    return ht, yt


if __name__ == "__main__":
    B, H, DIN, DOUT, T = 8, 32, 16, 24, 8

    key = jax.random.PRNGKey(0)
    k_h, k_x, k_s, k_p = jax.random.split(key, 4)

    ht_1 = jax.random.normal(k_h, (B, H), jnp.float32)
    xt = jax.random.normal(k_x, (B, DIN), jnp.float32)
    x_seq = jax.random.normal(k_s, (T, B, DIN), jnp.float32)
    params = init_params(k_p, H, DIN, DOUT)

    # --- single-step (exact GRUCell.forward semantics), f32 ---------------
    ht, yt = gru_cell_pallas(ht_1, xt, params)
    jax.block_until_ready((ht, yt))
    ht_ref, yt_ref = gru_cell_ref(ht_1, xt, params)
    assert ht.shape == (B, H) and yt.shape == (B, DOUT)
    assert jnp.allclose(ht, ht_ref, atol=2e-5, rtol=2e-5)
    assert jnp.allclose(yt, yt_ref, atol=2e-5, rtol=2e-5)

    # --- amortized sequence: T steps in ONE pallas_call, f32 --------------
    ht_seq, yt_seq = gru_sequence_pallas(ht_1, x_seq, params)
    jax.block_until_ready((ht_seq, yt_seq))

    def step(h, x):
        h2, y = gru_cell_ref(h, x, params)
        return h2, (h2, y)

    _, (ht_seq_ref, yt_seq_ref) = lax.scan(step, ht_1, x_seq)
    assert ht_seq.shape == (T, B, H) and yt_seq.shape == (T, B, DOUT)
    assert jnp.allclose(ht_seq, ht_seq_ref, atol=1e-4, rtol=1e-4)
    assert jnp.allclose(yt_seq, yt_seq_ref, atol=1e-4, rtol=1e-4)

    # --- bf16 weights/activations (v6e/v7x MXU path), f32 accumulate ------
    ht_bf, yt_bf = gru_sequence_pallas(ht_1, x_seq, params,
                                       compute_dtype=jnp.bfloat16)
    jax.block_until_ready((ht_bf, yt_bf))
    assert jnp.all(jnp.isfinite(yt_bf))
    assert float(jnp.max(jnp.abs(yt_bf - yt_seq_ref))) < 0.3  # bf16 tolerance

    print("KERNEL_OK")
</pallas_src>

<mosaic_0001>
module attributes {stable_mosaic.version = 11 : i64} {
  func.func @_gru_kernel(%arg0: i32, %arg1: memref<8x128xf32, #tpu.memory_space<vmem>>, %arg2: memref<1x8x128xf32, #tpu.memory_space<vmem>>, %arg3: memref<128x384xf32, #tpu.memory_space<vmem>>, %arg4: memref<128x256xf32, #tpu.memory_space<vmem>>, %arg5: memref<128x128xf32, #tpu.memory_space<vmem>>, %arg6: memref<128x128xf32, #tpu.memory_space<vmem>>, %arg7: memref<1x256xf32, #tpu.memory_space<vmem>>, %arg8: memref<1x128xf32, #tpu.memory_space<vmem>>, %arg9: memref<1x128xf32, #tpu.memory_space<vmem>>, %arg10: memref<1x8x128xf32, #tpu.memory_space<vmem>>, %arg11: memref<1x8x128xf32, #tpu.memory_space<vmem>>, %arg12: memref<8x128xf32, #tpu.memory_space<vmem>>) attributes {dimension_semantics = [#tpu.dimension_semantics<arbitrary>], iteration_bounds = array<i64: 1>, scalar_prefetch = 0 : i64, scratch_operands = 1 : i64, tpu.core_type = #tpu.core_type<tc>, window_params = [{pipeline_mode = #tpu.pipeline_mode<synchronous>, transform_indices = @transform_0, window_bounds = array<i64: 8, 128>}, {transform_indices = @transform_1, window_bounds = array<i64: 1, 8, 128>}, {pipeline_mode = #tpu.pipeline_mode<synchronous>, transform_indices = @transform_2, window_bounds = array<i64: 128, 384>}, {pipeline_mode = #tpu.pipeline_mode<synchronous>, transform_indices = @transform_3, window_bounds = array<i64: 128, 256>}, {pipeline_mode = #tpu.pipeline_mode<synchronous>, transform_indices = @transform_4, window_bounds = array<i64: 128, 128>}, {pipeline_mode = #tpu.pipeline_mode<synchronous>, transform_indices = @transform_5, window_bounds = array<i64: 128, 128>}, {pipeline_mode = #tpu.pipeline_mode<synchronous>, transform_indices = @transform_6, window_bounds = array<i64: 1, 256>}, {pipeline_mode = #tpu.pipeline_mode<synchronous>, transform_indices = @transform_7, window_bounds = array<i64: 1, 128>}, {pipeline_mode = #tpu.pipeline_mode<synchronous>, transform_indices = @transform_8, window_bounds = array<i64: 1, 128>}, {transform_indices = @transform_9, window_bounds = array<i64: 1, 8, 128>}, {transform_indices = @transform_10, window_bounds = array<i64: 1, 8, 128>}]} {
    %c0_i32 = arith.constant 0 : i32
    %0 = arith.cmpi eq, %arg0, %c0_i32 : i32
    %1 = arith.extui %0 : i1 to i32
    %c0_i32_0 = arith.constant 0 : i32
    %2 = arith.cmpi ne, %1, %c0_i32_0 : i32
    scf.if %2 {
      %c0_32 = arith.constant 0 : index
      %c0_33 = arith.constant 0 : index
      %48 = vector.load %arg1[%c0_32, %c0_33] : memref<8x128xf32, #tpu.memory_space<vmem>>, vector<8x128xf32>
      %c0_34 = arith.constant 0 : index
      %c0_35 = arith.constant 0 : index
      %49 = vector.load %arg12[%c0_34, %c0_35] : memref<8x128xf32, #tpu.memory_space<vmem>>, vector<8x128xf32>
      tpu.vector_store %arg12[%c0_34, %c0_35], %48 {strides = array<i32>} : memref<8x128xf32, #tpu.memory_space<vmem>>, vector<8x128xf32>,
    } else {
    }
    %c0 = arith.constant 0 : index
    %c0_1 = arith.constant 0 : index
    %3 = vector.load %arg12[%c0, %c0_1] : memref<8x128xf32, #tpu.memory_space<vmem>>, vector<8x128xf32>
    %c0_2 = arith.constant 0 : index
    %c0_3 = arith.constant 0 : index
    %c0_4 = arith.constant 0 : index
    %4 = vector.load %arg2[%c0_2, %c0_3, %c0_4] : memref<1x8x128xf32, #tpu.memory_space<vmem>>, vector<1x8x128xf32>
    %5 = vector.shape_cast %4 : vector<1x8x128xf32> to vector<8x128xf32>
    %c0_5 = arith.constant 0 : index
    %c0_6 = arith.constant 0 : index
    %6 = vector.load %arg3[%c0_5, %c0_6] : memref<128x384xf32, #tpu.memory_space<vmem>>, vector<128x384xf32>
    %cst = arith.constant dense<0.000000e+00> : vector<8x384xf32>
    %7 = tpu.matmul %5, %6, %cst {dimension_numbers = #tpu.dot_dimension_numbers<[1], [0], [0], [1], [0, 0, 1, 1], [], []>} : vector<8x128xf32>, vector<128x384xf32>, vector<8x384xf32> -> vector<8x384xf32>
    %c0_7 = arith.constant 0 : index
    %c0_8 = arith.constant 0 : index
    %8 = vector.load %arg4[%c0_7, %c0_8] : memref<128x256xf32, #tpu.memory_space<vmem>>, vector<128x256xf32>
    %cst_9 = arith.constant dense<0.000000e+00> : vector<8x256xf32>
    %9 = tpu.matmul %3, %8, %cst_9 {dimension_numbers = #tpu.dot_dimension_numbers<[1], [0], [0], [1], [0, 0, 1, 1], [], []>} : vector<8x128xf32>, vector<128x256xf32>, vector<8x256xf32> -> vector<8x256xf32>
    %10 = vector.extract_strided_slice %7 {offsets = [0, 0], sizes = [8, 256], strides = [1, 1]} : vector<8x384xf32> to vector<8x256xf32>
    %11 = arith.addf %9, %10 : vector<8x256xf32>
    %c0_10 = arith.constant 0 : index
    %c0_11 = arith.constant 0 : index
    %12 = vector.load %arg7[%c0_10, %c0_11] : memref<1x256xf32, #tpu.memory_space<vmem>>, vector<1x256xf32>
    %13 = vector.broadcast %12 : vector<1x256xf32> to vector<8x256xf32>
    %14 = arith.addf %11, %13 : vector<8x256xf32>
    %15 = arith.negf %14 : vector<8x256xf32>
    %16 = math.exp %15 : vector<8x256xf32>
    %cst_12 = arith.constant 1.000000e+00 : f32
    %17 = vector.broadcast %cst_12 : f32 to vector<8x256xf32>
    %18 = arith.addf %17, %16 : vector<8x256xf32>
    %19 = arith.divf %17, %18 : vector<8x256xf32>
    %20 = vector.extract_strided_slice %19 {offsets = [0, 0], sizes = [8, 128], strides = [1, 1]} : vector<8x256xf32> to vector<8x128xf32>
    %21 = vector.extract_strided_slice %19 {offsets = [0, 128], sizes = [8, 128], strides = [1, 1]} : vector<8x256xf32> to vector<8x128xf32>
    %22 = arith.mulf %21, %3 : vector<8x128xf32>
    %c0_13 = arith.constant 0 : index
    %c0_14 = arith.constant 0 : index
    %23 = vector.load %arg5[%c0_13, %c0_14] : memref<128x128xf32, #tpu.memory_space<vmem>>, vector<128x128xf32>
    %cst_15 = arith.constant dense<0.000000e+00> : vector<8x128xf32>
    %24 = tpu.matmul %22, %23, %cst_15 {dimension_numbers = #tpu.dot_dimension_numbers<[1], [0], [0], [1], [0, 0, 1, 1], [], []>} : vector<8x128xf32>, vector<128x128xf32>, vector<8x128xf32> -> vector<8x128xf32>
    %25 = vector.extract_strided_slice %7 {offsets = [0, 256], sizes = [8, 128], strides = [1, 1]} : vector<8x384xf32> to vector<8x128xf32>
    %26 = arith.addf %24, %25 : vector<8x128xf32>
    %c0_16 = arith.constant 0 : index
    %c0_17 = arith.constant 0 : index
    %27 = vector.load %arg8[%c0_16, %c0_17] : memref<1x128xf32, #tpu.memory_space<vmem>>, vector<1x128xf32>
    %28 = vector.broadcast %27 : vector<1x128xf32> to vector<8x128xf32>
    %29 = arith.addf %26, %28 : vector<8x128xf32>
    %30 = math.tanh %29 : vector<8x128xf32>
    %cst_18 = arith.constant 1.000000e+00 : f32
    %31 = vector.broadcast %cst_18 : f32 to vector<8x128xf32>
    %32 = arith.subf %31, %20 : vector<8x128xf32>
    %33 = arith.mulf %32, %3 : vector<8x128xf32>
    %34 = arith.mulf %20, %30 : vector<8x128xf32>
    %35 = arith.addf %33, %34 : vector<8x128xf32>
    %c0_19 = arith.constant 0 : index
    %c0_20 = arith.constant 0 : index
    %36 = vector.load %arg6[%c0_19, %c0_20] : memref<128x128xf32, #tpu.memory_space<vmem>>, vector<128x128xf32>
    %cst_21 = arith.constant dense<0.000000e+00> : vector<8x128xf32>
    %37 = tpu.matmul %35, %36, %cst_21 {dimension_numbers = #tpu.dot_dimension_numbers<[1], [0], [0], [1], [0, 0, 1, 1], [], []>} : vector<8x128xf32>, vector<128x128xf32>, vector<8x128xf32> -> vector<8x128xf32>
    %c0_22 = arith.constant 0 : index
    %c0_23 = arith.constant 0 : index
    %38 = vector.load %arg9[%c0_22, %c0_23] : memref<1x128xf32, #tpu.memory_space<vmem>>, vector<1x128xf32>
    %39 = vector.broadcast %38 : vector<1x128xf32> to vector<8x128xf32>
    %40 = arith.addf %37, %39 : vector<8x128xf32>
    %c0_24 = arith.constant 0 : index
    %c0_25 = arith.constant 0 : index
    %41 = vector.load %arg12[%c0_24, %c0_25] : memref<8x128xf32, #tpu.memory_space<vmem>>, vector<8x128xf32>
    tpu.vector_store %arg12[%c0_24, %c0_25], %35 {strides = array<i32>} : memref<8x128xf32, #tpu.memory_space<vmem>>, vector<8x128xf32>,
    %c0_26 = arith.constant 0 : index
    %c0_27 = arith.constant 0 : index
    %c0_28 = arith.constant 0 : index
    %42 = vector.load %arg10[%c0_26, %c0_27, %c0_28] : memref<1x8x128xf32, #tpu.memory_space<vmem>>, vector<1x8x128xf32>
    %43 = vector.shape_cast %42 : vector<1x8x128xf32> to vector<8x128xf32>
    %44 = vector.shape_cast %35 : vector<8x128xf32> to vector<1x8x128xf32>
    tpu.vector_store %arg10[%c0_26, %c0_27, %c0_28], %44 {strides = array<i32>} : memref<1x8x128xf32, #tpu.memory_space<vmem>>, vector<1x8x128xf32>,
    %c0_29 = arith.constant 0 : index
    %c0_30 = arith.constant 0 : index
    %c0_31 = arith.constant 0 : index
    %45 = vector.load %arg11[%c0_29, %c0_30, %c0_31] : memref<1x8x128xf32, #tpu.memory_space<vmem>>, vector<1x8x128xf32>
    %46 = vector.shape_cast %45 : vector<1x8x128xf32> to vector<8x128xf32>
    %47 = vector.shape_cast %40 : vector<8x128xf32> to vector<1x8x128xf32>
    tpu.vector_store %arg11[%c0_29, %c0_30, %c0_31], %47 {strides = array<i32>} : memref<1x8x128xf32, #tpu.memory_space<vmem>>, vector<1x8x128xf32>,
    return
  }
  func.func @transform_0(%arg0: i32) -> (i32, i32) {
    %c0_i32 = arith.constant 0 : i32
    %c0_i32_0 = arith.constant 0 : i32
    %c0_i32_1 = arith.constant 0 : i32
    return %c0_i32, %c0_i32_0 : i32, i32
  }
  func.func @transform_1(%arg0: i32) -> (i32, i32, i32) {
    %c0_i32 = arith.constant 0 : i32
    %c0_i32_0 = arith.constant 0 : i32
    %c0_i32_1 = arith.constant 0 : i32
    return %arg0, %c0_i32, %c0_i32_0 : i32, i32, i32
  }
  func.func @transform_2(%arg0: i32) -> (i32, i32) {
    %c0_i32 = arith.constant 0 : i32
    %c0_i32_0 = arith.constant 0 : i32
    %c0_i32_1 = arith.constant 0 : i32
    return %c0_i32, %c0_i32_0 : i32, i32
  }
  func.func @transform_3(%arg0: i32) -> (i32, i32) {
    %c0_i32 = arith.constant 0 : i32
    %c0_i32_0 = arith.constant 0 : i32
    %c0_i32_1 = arith.constant 0 : i32
    return %c0_i32, %c0_i32_0 : i32, i32
  }
  func.func @transform_4(%arg0: i32) -> (i32, i32) {
    %c0_i32 = arith.constant 0 : i32
    %c0_i32_0 = arith.constant 0 : i32
    %c0_i32_1 = arith.constant 0 : i32
    return %c0_i32, %c0_i32_0 : i32, i32
  }
  func.func @transform_5(%arg0: i32) -> (i32, i32) {
    %c0_i32 = arith.constant 0 : i32
    %c0_i32_0 = arith.constant 0 : i32
    %c0_i32_1 = arith.constant 0 : i32
    return %c0_i32, %c0_i32_0 : i32, i32
  }
  func.func @transform_6(%arg0: i32) -> (i32, i32) {
    %c0_i32 = arith.constant 0 : i32
    %c0_i32_0 = arith.constant 0 : i32
    %c0_i32_1 = arith.constant 0 : i32
    return %c0_i32, %c0_i32_0 : i32, i32
  }
  func.func @transform_7(%arg0: i32) -> (i32, i32) {
    %c0_i32 = arith.constant 0 : i32
    %c0_i32_0 = arith.constant 0 : i32
    %c0_i32_1 = arith.constant 0 : i32
    return %c0_i32, %c0_i32_0 : i32, i32
  }
  func.func @transform_8(%arg0: i32) -> (i32, i32) {
    %c0_i32 = arith.constant 0 : i32
    %c0_i32_0 = arith.constant 0 : i32
    %c0_i32_1 = arith.constant 0 : i32
    return %c0_i32, %c0_i32_0 : i32, i32
  }
  func.func @transform_9(%arg0: i32) -> (i32, i32, i32) {
    %c0_i32 = arith.constant 0 : i32
    %c0_i32_0 = arith.constant 0 : i32
    %c0_i32_1 = arith.constant 0 : i32
    return %arg0, %c0_i32, %c0_i32_0 : i32, i32, i32
  }
  func.func @transform_10(%arg0: i32) -> (i32, i32, i32) {
    %c0_i32 = arith.constant 0 : i32
    %c0_i32_0 = arith.constant 0 : i32
    %c0_i32_1 = arith.constant 0 : i32
    return %arg0, %c0_i32, %c0_i32_0 : i32, i32, i32
  }
}

</mosaic_0001>

<llo_original>
// kernel: tpu_custom_call.1
$region0: #{tpu_custom_call.1}
  #allocation0 [shape = 'u32[]', space=smem, size = 0x4, offset = 0x4, fixed_abs, tag = 'smem constant byte address 0x4 - core index']
  #allocation1 [shape = 'u32[144,128]{1,0:T(1,128)}', space=vmem, size = 0x12000, scoped, tag = 'internal scratch']
  #allocation2 [shape = 'f32[8,128]{1,0:T(8,128)}', space=vmem, size = 0x1000, scoped, tag = 'scratch operand']
  %s0 = inlined_call_operand.hbm [shape: f32[8,128], index: 0, kind: input, shape index: {}]
  %s1 = inlined_call_operand.hbm [shape: f32[1,8,128], index: 1, kind: input, shape index: {}]
  %s2 = inlined_call_operand.hbm [shape: f32[128,384], index: 2, kind: input, shape index: {}]
  %s3 = inlined_call_operand.hbm [shape: f32[128,256], index: 3, kind: input, shape index: {}]
  %s4 = inlined_call_operand.hbm [shape: f32[128,128], index: 4, kind: input, shape index: {}]
  %s5 = inlined_call_operand.hbm [shape: f32[128,128], index: 5, kind: input, shape index: {}]
  %s6 = inlined_call_operand.vmem [shape: f32[1,256], index: 6, kind: input, shape index: {}]
  %s7 = inlined_call_operand.vmem [shape: f32[1,128], index: 7, kind: input, shape index: {}]
  %s8 = inlined_call_operand.vmem [shape: f32[1,128], index: 8, kind: input, shape index: {}]
  %s9 = inlined_call_operand.hbm [shape: f32[1,8,128], index: 9, kind: output, shape index: {0}]
  %s10 = inlined_call_operand.hbm [shape: f32[1,8,128], index: 10, kind: output, shape index: {1}]
  %11 = xla_tuple %s9, %s10
  %s12 = sld [smem:[#allocation0]]
  $region82: #{tpu_custom_call.1} parent=0
    _
  %s14 = ssub.s32 1, %s12
  %s15 = scalar_select 0, %s14, %s12
  $region1: #{tpu_custom_call.1} parent=0
    #allocation3 [shape = 'u8[4096]{0}', space=vmem, size = 0x1000, scoped, tag = 'input window, operand 0, single buffered']
    #allocation4 [shape = 's32[1]{0}', space=sflag, size = 0x4, scoped, tag = 'scoped memory for tpu_custom_call.1']
    #allocation5 [shape = 's32[1]{0}', space=sflag, size = 0x4, scoped, tag = 'scoped memory for tpu_custom_call.1']
    #allocation6 [shape = 'u8[4096]{0}', space=vmem, size = 0x1000, scoped, tag = 'input window, operand 1, single buffered']
    #allocation7 [shape = 's32[1]{0}', space=sflag, size = 0x4, scoped, tag = 'scoped memory for tpu_custom_call.1']
    #allocation8 [shape = 'u8[196608]{0}', space=vmem, size = 0x30000, scoped, tag = 'input window, operand 2, single buffered']
    #allocation9 [shape = 'u8[131072]{0}', space=vmem, size = 0x20000, scoped, tag = 'input window, operand 3, single buffered']
    #allocation10 [shape = 's32[1]{0}', space=sflag, size = 0x4, scoped, tag = 'scoped memory for tpu_custom_call.1']
    #allocation11 [shape = 'u8[65536]{0}', space=vmem, size = 0x10000, scoped, tag = 'input window, operand 4, single buffered']
    #allocation12 [shape = 'u8[65536]{0}', space=vmem, size = 0x10000, scoped, tag = 'input window, operand 5, single buffered']
    #allocation13 [shape = 's32[1]{0}', space=sflag, size = 0x4, scoped, tag = 'scoped memory for tpu_custom_call.1']
    #allocation14 [shape = 'u8[4096]{0}', space=vmem, size = 0x1000, scoped, tag = 'output window, operand 0, single buffered']
    #allocation15 [shape = 'u8[4096]{0}', space=vmem, size = 0x1000, scoped, tag = 'output window, operand 1, single buffered']
    #allocation16 [shape = 's32[1]{0}', space=sflag, size = 0x4, scoped, tag = 'scoped memory for tpu_custom_call.1']
    %16 = vsyncpa [#allocation4], 0
    %17 = vsyncpa [#allocation7], 0
    %18 = vsyncpa [#allocation10], 0
    %19 = vsyncpa [#allocation13], 0
    %20 = vsyncpa [#allocation5], 0
    %21 = vsyncpa [#allocation16], 0
    // Predicated region
    $region2: #{tpu_custom_call.1} parent=1 // pred_check
      _
    $region3: #{tpu_custom_call.1} parent=1 // pred_check_branch
      %23 = sbr.rel (0) target = $region5
    $region4: #{tpu_custom_call.1} parent=1 // pred_region
      %s25 = ssub.s32 128, 128
      %26 = vsyncadd [#allocation4], %s25
      %s28 = sshll.u32 [#allocation3], 4
      %s29 = int_to_ptr.vmem [resolvable:$true] %s28
      %31 = dma.hbm_to_vmem [thread:$0]  %s0, 128, %s29, [#allocation4]
    $region5: #{tpu_custom_call.1} parent=1 // pred_fallthru
      _
    // Predicated region
    $region6: #{tpu_custom_call.1} parent=1 // pred_check
      _
    $region7: #{tpu_custom_call.1} parent=1 // pred_check_branch
      %33 = sbr.rel (0) target = $region9
    $region8: #{tpu_custom_call.1} parent=1 // pred_region
      %s35 = ssub.s32 128, 128
      %36 = vsyncadd [#allocation7], %s35
      %s38 = sshll.u32 [#allocation6], 4
      %s39 = int_to_ptr.vmem [resolvable:$true] %s38
      %41 = dma.hbm_to_vmem [thread:$0]  %s1, 128, %s39, [#allocation7]
    $region9: #{tpu_custom_call.1} parent=1 // pred_fallthru
      _
    // Predicated region
    $region10: #{tpu_custom_call.1} parent=1 // pred_check
      _
    $region11: #{tpu_custom_call.1} parent=1 // pred_check_branch
      %43 = sbr.rel (0) target = $region13
    $region12: #{tpu_custom_call.1} parent=1 // pred_region
      %s45 = ssub.s32 6144, 6144
      %46 = vsyncadd [#allocation7], %s45
      %s47 = sshll.u32 [#allocation8], 4
      %s48 = int_to_ptr.vmem [resolvable:$true] %s47
      %53 = dma.hbm_to_vmem [thread:$0]  %s2, 6144, %s48, [#allocation7], 384, 384, 24
    $region13: #{tpu_custom_call.1} parent=1 // pred_fallthru
      _
    // Predicated region
    $region14: #{tpu_custom_call.1} parent=1 // pred_check
      _
    $region15: #{tpu_custom_call.1} parent=1 // pred_check_branch
      %55 = sbr.rel (0) target = $region17
    $region16: #{tpu_custom_call.1} parent=1 // pred_region
      %s57 = ssub.s32 4096, 4096
      %58 = vsyncadd [#allocation10], %s57
      %s59 = sshll.u32 [#allocation9], 4
      %s60 = int_to_ptr.vmem [resolvable:$true] %s59
      %65 = dma.hbm_to_vmem [thread:$0]  %s3, 4096, %s60, [#allocation10], 256, 256, 16
    $region17: #{tpu_custom_call.1} parent=1 // pred_fallthru
      _
    // Predicated region
    $region18: #{tpu_custom_call.1} parent=1 // pred_check
      _
    $region19: #{tpu_custom_call.1} parent=1 // pred_check_branch
      %67 = sbr.rel (0) target = $region21
    $region20: #{tpu_custom_call.1} parent=1 // pred_region
      %s69 = ssub.s32 2048, 2048
      %70 = vsyncadd [#allocation10], %s69
      %s71 = sshll.u32 [#allocation11], 4
      %s72 = int_to_ptr.vmem [resolvable:$true] %s71
      %77 = dma.hbm_to_vmem [thread:$0]  %s4, 2048, %s72, [#allocation10], 128, 128, 8
    $region21: #{tpu_custom_call.1} parent=1 // pred_fallthru
      _
    // Predicated region
    $region22: #{tpu_custom_call.1} parent=1 // pred_check
      _
    $region23: #{tpu_custom_call.1} parent=1 // pred_check_branch
      %79 = sbr.rel (0) target = $region25
    $region24: #{tpu_custom_call.1} parent=1 // pred_region
      %s81 = ssub.s32 2048, 2048
      %82 = vsyncadd [#allocation13], %s81
      %s83 = sshll.u32 [#allocation12], 4
      %s84 = int_to_ptr.vmem [resolvable:$true] %s83
      %89 = dma.hbm_to_vmem [thread:$0]  %s5, 2048, %s84, [#allocation13], 128, 128, 8
    $region25: #{tpu_custom_call.1} parent=1 // pred_fallthru
      _
    // Predicated region
    $region26: #{tpu_custom_call.1} parent=1 // pred_check
      _
    $region27: #{tpu_custom_call.1} parent=1 // pred_check_branch
      %91 = sbr.rel (0) target = $region29
    $region28: #{tpu_custom_call.1} parent=1 // pred_region
      _
    $region29: #{tpu_custom_call.1} parent=1 // pred_fallthru
      _
    // Predicated region
    $region30: #{tpu_custom_call.1} parent=1 // pred_check
      _
    $region31: #{tpu_custom_call.1} parent=1 // pred_check_branch
      %93 = sbr.rel (0) target = $region33
    $region32: #{tpu_custom_call.1} parent=1 // pred_region
      _
    $region33: #{tpu_custom_call.1} parent=1 // pred_fallthru
      _
    // Predicated region
    $region34: #{tpu_custom_call.1} parent=1 // pred_check
      _
    $region35: #{tpu_custom_call.1} parent=1 // pred_check_branch
      %95 = sbr.rel (0) target = $region37
    $region36: #{tpu_custom_call.1} parent=1 // pred_region
      _
    $region37: #{tpu_custom_call.1} parent=1 // pred_fallthru
      _
    // Predicated region
    $region38: #{tpu_custom_call.1} parent=1 // pred_check
      _
    $region39: #{tpu_custom_call.1} parent=1 // pred_check_branch
      %97 = sbr.rel (0) target = $region41
    $region40: #{tpu_custom_call.1} parent=1 // pred_region
      %98 = dma.done [#allocation4], 128
    $region41: #{tpu_custom_call.1} parent=1 // pred_fallthru
      _
    // Predicated region
    $region42: #{tpu_custom_call.1} parent=1 // pred_check
      _
    $region43: #{tpu_custom_call.1} parent=1 // pred_check_branch
      %100 = sbr.rel (0) target = $region45
    $region44: #{tpu_custom_call.1} parent=1 // pred_region
      %101 = dma.done [#allocation7], 128
    $region45: #{tpu_custom_call.1} parent=1 // pred_fallthru
      _
    // Predicated region
    $region46: #{tpu_custom_call.1} parent=1 // pred_check
      _
    $region47: #{tpu_custom_call.1} parent=1 // pred_check_branch
      %103 = sbr.rel (0) target = $region49
    $region48: #{tpu_custom_call.1} parent=1 // pred_region
      %104 = dma.done [#allocation7], 6144
    $region49: #{tpu_custom_call.1} parent=1 // pred_fallthru
      _
    // Predicated region
    $region50: #{tpu_custom_call.1} parent=1 // pred_check
      _
    $region51: #{tpu_custom_call.1} parent=1 // pred_check_branch
      %106 = sbr.rel (0) target = $region53
    $region52: #{tpu_custom_call.1} parent=1 // pred_region
      %107 = dma.done [#allocation10], 4096
    $region53: #{tpu_custom_call.1} parent=1 // pred_fallthru
      _
    // Predicated region
    $region54: #{tpu_custom_call.1} parent=1 // pred_check
      _
    $region55: #{tpu_custom_call.1} parent=1 // pred_check_branch
      %109 = sbr.rel (0) target = $region57
    $region56: #{tpu_custom_call.1} parent=1 // pred_region
      %110 = dma.done [#allocation10], 2048
    $region57: #{tpu_custom_call.1} parent=1 // pred_fallthru
      _
    // Predicated region
    $region58: #{tpu_custom_call.1} parent=1 // pred_check
      _
    $region59: #{tpu_custom_call.1} parent=1 // pred_check_branch
      %112 = sbr.rel (0) target = $region61
    $region60: #{tpu_custom_call.1} parent=1 // pred_region
      %113 = dma.done [#allocation13], 2048
    $region61: #{tpu_custom_call.1} parent=1 // pred_fallthru
      _
    %p114 = scmp.eq.s32.totalorder 0, 0
    // Predicated region
    $region62: #{tpu_custom_call.1} parent=1 // pred_check
      %p115 = pneg %p114
    $region63: #{tpu_custom_call.1} parent=1 // pred_check_branch
      %117 = sbr.rel (%p115) target = $region65
    $region64: #{tpu_custom_call.1} parent=1 // pred_region
      %v118 = vld [vmem:[#allocation3] sm:$0xff]
      %119 = vst [vmem:[#allocation2] sm:$0xff] %v118
    $region65: #{tpu_custom_call.1} parent=1 // pred_fallthru
      _
    %v120 = vld [vmem:[#allocation2] sm:$0xff]
    %v121 = vld [vmem:[#allocation6] sm:$0xff]
    %v122 = vld [vmem:[#allocation8] sm:$0xff]
    %v123 = vld [vmem:[#allocation8 + $0x8] sm:$0xff]
    %v124 = vld [vmem:[#allocation8 + $0x10] sm:$0xff]
    %v125 = vld [vmem:[#allocation8 + $0x18] sm:$0xff]
    %v126 = vld [vmem:[#allocation8 + $0x20] sm:$0xff]
    %v127 = vld [vmem:[#allocation8 + $0x28] sm:$0xff]
    %v128 = vld [vmem:[#allocation8 + $0x30] sm:$0xff]
    %v129 = vld [vmem:[#allocation8 + $0x38] sm:$0xff]
    %v130 = vld [vmem:[#allocation8 + $0x40] sm:$0xff]
    %v131 = vld [vmem:[#allocation8 + $0x48] sm:$0xff]
    %v132 = vld [vmem:[#allocation8 + $0x50] sm:$0xff]
    %v133 = vld [vmem:[#allocation8 + $0x58] sm:$0xff]
    %v134 = vld [vmem:[#allocation8 + $0x60] sm:$0xff]
    %v135 = vld [vmem:[#allocation8 + $0x68] sm:$0xff]
    %v136 = vld [vmem:[#allocation8 + $0x70] sm:$0xff]
    %v137 = vld [vmem:[#allocation8 + $0x78] sm:$0xff]
    %v138 = vld [vmem:[#allocation8 + $0x80] sm:$0xff]
    %v139 = vld [vmem:[#allocation8 + $0x88] sm:$0xff]
    %v140 = vld [vmem:[#allocation8 + $0x90] sm:$0xff]
    %v141 = vld [vmem:[#allocation8 + $0x98] sm:$0xff]
    %v142 = vld [vmem:[#allocation8 + $0xa0] sm:$0xff]
    %v143 = vld [vmem:[#allocation8 + $0xa8] sm:$0xff]
    %v144 = vld [vmem:[#allocation8 + $0xb0] sm:$0xff]
    %v145 = vld [vmem:[#allocation8 + $0xb8] sm:$0xff]
    %v146 = vld [vmem:[#allocation8 + $0xc0] sm:$0xff]
    %v147 = vld [vmem:[#allocation8 + $0xc8] sm:$0xff]
    %v148 = vld [vmem:[#allocation8 + $0xd0] sm:$0xff]
    %v149 = vld [vmem:[#allocation8 + $0xd8] sm:$0xff]
    %v150 = vld [vmem:[#allocation8 + $0xe0] sm:$0xff]
    %v151 = vld [vmem:[#allocation8 + $0xe8] sm:$0xff]
    %v152 = vld [vmem:[#allocation8 + $0xf0] sm:$0xff]
    %v153 = vld [vmem:[#allocation8 + $0xf8] sm:$0xff]
    %v154 = vld [vmem:[#allocation8 + $0x100] sm:$0xff]
    %v155 = vld [vmem:[#allocation8 + $0x108] sm:$0xff]
    %v156 = vld [vmem:[#allocation8 + $0x110] sm:$0xff]
    %v157 = vld [vmem:[#allocation8 + $0x118] sm:$0xff]
    %v158 = vld [vmem:[#allocation8 + $0x120] sm:$0xff]
    %v159 = vld [vmem:[#allocation8 + $0x128] sm:$0xff]
    %v160 = vld [vmem:[#allocation8 + $0x130] sm:$0xff]
    %v161 = vld [vmem:[#allocation8 + $0x138] sm:$0xff]
    %v162 = vld [vmem:[#allocation8 + $0x140] sm:$0xff]
    %v163 = vld [vmem:[#allocation8 + $0x148] sm:$0xff]
    %v164 = vld [vmem:[#allocation8 + $0x150] sm:$0xff]
    %v165 = vld [vmem:[#allocation8 + $0x158] sm:$0xff]
    %v166 = vld [vmem:[#allocation8 + $0x160] sm:$0xff]
    %v167 = vld [vmem:[#allocation8 + $0x168] sm:$0xff]
    %v168 = vld [vmem:[#allocation8 + $0x170] sm:$0xff]
    %v169 = vld [vmem:[#allocation8 + $0x178] sm:$0xff]
    %170 = vmatprep.subr.mxu0 %v123
    %171 = vmatpush1.msra.mxu0 %v122
    %172 = vmatprep.subr.mxu0 %v126
    %173 = vmatpush1.msra.mxu0 %v125
    %174 = vmatprep.subr.mxu0 %v129
    %175 = vmatpush1.msra.mxu0 %v128
    %176 = vmatprep.subr.mxu0 %v132
    %177 = vmatpush1.msra.mxu0 %v131
    %178 = vmatprep.subr.mxu0 %v135
    %179 = vmatpush1.msra.mxu0 %v134
    %180 = vmatprep.subr.mxu0 %v138
    %181 = vmatpush1.msra.mxu0 %v137
    %182 = vmatprep.subr.mxu0 %v141
    %183 = vmatpush1.msra.mxu0 %v140
    %184 = vmatprep.subr.mxu0 %v144
    %185 = vmatpush1.msra.mxu0 %v143
    %186 = vmatprep.subr.mxu0 %v147
    %187 = vmatpush1.msra.mxu0 %v146
    %188 = vmatprep.subr.mxu0 %v150
    %189 = vmatpush1.msra.mxu0 %v149
    %190 = vmatprep.subr.mxu0 %v153
    %191 = vmatpush1.msra.mxu0 %v152
    %192 = vmatprep.subr.mxu0 %v156
    %193 = vmatpush1.msra.mxu0 %v155
    %194 = vmatprep.subr.mxu0 %v159
    %195 = vmatpush1.msra.mxu0 %v158
    %196 = vmatprep.subr.mxu0 %v162
    %197 = vmatpush1.msra.mxu0 %v161
    %198 = vmatprep.subr.mxu0 %v165
    %199 = vmatpush1.msra.mxu0 %v164
    %200 = vmatprep.subr.mxu0 %v168
    %201 = vmatpush1.msra.mxu0 %v167
    %202 = vmatprep.subr.mxu0 0.0
    %203 = vmatpush1.msra.mxu0 0.0
    %204 = vmatprep.subr.mxu0 0.0
    %205 = vmatpush1.msra.mxu0 0.0
    %206 = vmatprep.subr.mxu0 0.0
    %207 = vmatpush1.msra.mxu0 0.0
    %208 = vmatprep.subr.mxu0 0.0
    %209 = vmatpush1.msra.mxu0 0.0
    %210 = vmatprep.subr.mxu0 0.0
    %211 = vmatpush1.msra.mxu0 0.0
    %212 = vmatprep.subr.mxu0 0.0
    %213 = vmatpush1.msra.mxu0 0.0
    %214 = vmatprep.subr.mxu0 0.0
    %215 = vmatpush1.msra.mxu0 0.0
    %216 = vmatprep.subr.mxu0 0.0
    %217 = vmatpush1.msra.mxu0 0.0
    %218 = vmatprep.subr.mxu0 0.0
    %219 = vmatpush1.msra.mxu0 0.0
    %220 = vmatprep.subr.mxu0 0.0
    %221 = vmatpush1.msra.mxu0 0.0
    %222 = vmatprep.subr.mxu0 0.0
    %223 = vmatpush1.msra.mxu0 0.0
    %224 = vmatprep.subr.mxu0 0.0
    %225 = vmatpush1.msra.mxu0 0.0
    %226 = vmatprep.subr.mxu0 0.0
    %227 = vmatpush1.msra.mxu0 0.0
    %228 = vmatprep.subr.mxu0 0.0
    %229 = vmatpush1.msra.mxu0 0.0
    %230 = vmatprep.subr.mxu0 0.0
    %231 = vmatpush1.msra.mxu0 0.0
    %232 = vmatprep.subr.mxu0 0.0
    %233 = vmatpush1.msra.mxu0 0.0
    %234 = vmatprep.mubr.f32.mxu0 0.0
    %235 = vmatmul.mubr.f32.gmra.mrb[0].mxu0 %v121
    %v236 = vpop.f32.mrb[0].mxu0
    %v237 = vadd.f32 0.0, %v236
    %v238 = vpop.f32.mrb[0].mxu0
    %v239 = vadd.f32 0.0, %v238
    %240 = vdwg.mxu0
    %241 = vmatprep.subr.mxu0 0.0
    %242 = vmatpush1.msra.mxu0 %v124
    %243 = vmatprep.subr.mxu0 0.0
    %244 = vmatpush1.msra.mxu0 %v127
    %245 = vmatprep.subr.mxu0 0.0
    %246 = vmatpush1.msra.mxu0 %v130
    %247 = vmatprep.subr.mxu0 0.0
    %248 = vmatpush1.msra.mxu0 %v133
    %249 = vmatprep.subr.mxu0 0.0
    %250 = vmatpush1.msra.mxu0 %v136
    %251 = vmatprep.subr.mxu0 0.0
    %252 = vmatpush1.msra.mxu0 %v139
    %253 = vmatprep.subr.mxu0 0.0
    %254 = vmatpush1.msra.mxu0 %v142
    %255 = vmatprep.subr.mxu0 0.0
    %256 = vmatpush1.msra.mxu0 %v145
    %257 = vmatprep.subr.mxu0 0.0
    %258 = vmatpush1.msra.mxu0 %v148
    %259 = vmatprep.subr.mxu0 0.0
    %260 = vmatpush1.msra.mxu0 %v151
    %261 = vmatprep.subr.mxu0 0.0
    %262 = vmatpush1.msra.mxu0 %v154
    %263 = vmatprep.subr.mxu0 0.0
    %264 = vmatpush1.msra.mxu0 %v157
    %265 = vmatprep.subr.mxu0 0.0
    %266 = vmatpush1.msra.mxu0 %v160
    %267 = vmatprep.subr.mxu0 0.0
    %268 = vmatpush1.msra.mxu0 %v163
    %269 = vmatprep.subr.mxu0 0.0
    %270 = vmatpush1.msra.mxu0 %v166
    %271 = vmatprep.subr.mxu0 0.0
    %272 = vmatpush1.msra.mxu0 %v169
    %273 = vmatprep.subr.mxu0 0.0
    %274 = vmatpush1.msra.mxu0 0.0
    %275 = vmatprep.subr.mxu0 0.0
    %276 = vmatpush1.msra.mxu0 0.0
    %277 = vmatprep.subr.mxu0 0.0
    %278 = vmatpush1.msra.mxu0 0.0
    %279 = vmatprep.subr.mxu0 0.0
    %280 = vmatpush1.msra.mxu0 0.0
    %281 = vmatprep.subr.mxu0 0.0
    %282 = vmatpush1.msra.mxu0 0.0
    %283 = vmatprep.subr.mxu0 0.0
    %284 = vmatpush1.msra.mxu0 0.0
    %285 = vmatprep.subr.mxu0 0.0
    %286 = vmatpush1.msra.mxu0 0.0
    %287 = vmatprep.subr.mxu0 0.0
    %288 = vmatpush1.msra.mxu0 0.0
    %289 = vmatprep.subr.mxu0 0.0
    %290 = vmatpush1.msra.mxu0 0.0
    %291 = vmatprep.subr.mxu0 0.0
    %292 = vmatpush1.msra.mxu0 0.0
    %293 = vmatprep.subr.mxu0 0.0
    %294 = vmatpush1.msra.mxu0 0.0
    %295 = vmatprep.subr.mxu0 0.0
    %296 = vmatpush1.msra.mxu0 0.0
    %297 = vmatprep.subr.mxu0 0.0
    %298 = vmatpush1.msra.mxu0 0.0
    %299 = vmatprep.subr.mxu0 0.0
    %300 = vmatpush1.msra.mxu0 0.0
    %301 = vmatprep.subr.mxu0 0.0
    %302 = vmatpush1.msra.mxu0 0.0
    %303 = vmatprep.subr.mxu0 0.0
    %304 = vmatpush1.msra.mxu0 0.0
    %305 = vmatprep.mubr.f32.mxu0 0.0
    %306 = vmatmul.mubr.f32.gmra.mrb[0].mxu0 %v121
    %v307 = vpop.f32.mrb[0].mxu0
    %v308 = vadd.f32 0.0, %v307
    %v309 = vpop.f32.mrb[0].mxu0
    %310 = vdwg.mxu0
    %v311 = vld [vmem:[#allocation9] sm:$0xff]
    %v312 = vld [vmem:[#allocation9 + $0x8] sm:$0xff]
    %v313 = vld [vmem:[#allocation9 + $0x10] sm:$0xff]
    %v314 = vld [vmem:[#allocation9 + $0x18] sm:$0xff]
    %v315 = vld [vmem:[#allocation9 + $0x20] sm:$0xff]
    %v316 = vld [vmem:[#allocation9 + $0x28] sm:$0xff]
    %v317 = vld [vmem:[#allocation9 + $0x30] sm:$0xff]
    %v318 = vld [vmem:[#allocation9 + $0x38] sm:$0xff]
    %v319 = vld [vmem:[#allocation9 + $0x40] sm:$0xff]
    %v320 = vld [vmem:[#allocation9 + $0x48] sm:$0xff]
    %v321 = vld [vmem:[#allocation9 + $0x50] sm:$0xff]
    %v322 = vld [vmem:[#allocation9 + $0x58] sm:$0xff]
    %v323 = vld [vmem:[#allocation9 + $0x60] sm:$0xff]
    %v324 = vld [vmem:[#allocation9 + $0x68] sm:$0xff]
    %v325 = vld [vmem:[#allocation9 + $0x70] sm:$0xff]
    %v326 = vld [vmem:[#allocation9 + $0x78] sm:$0xff]
    %v327 = vld [vmem:[#allocation9 + $0x80] sm:$0xff]
    %v328 = vld [vmem:[#allocation9 + $0x88] sm:$0xff]
    %v329 = vld [vmem:[#allocation9 + $0x90] sm:$0xff]
    %v330 = vld [vmem:[#allocation9 + $0x98] sm:$0xff]
    %v331 = vld [vmem:[#allocation9 + $0xa0] sm:$0xff]
    %v332 = vld [vmem:[#allocation9 + $0xa8] sm:$0xff]
    %v333 = vld [vmem:[#allocation9 + $0xb0] sm:$0xff]
    %v334 = vld [vmem:[#allocation9 + $0xb8] sm:$0xff]
    %v335 = vld [vmem:[#allocation9 + $0xc0] sm:$0xff]
    %v336 = vld [vmem:[#allocation9 + $0xc8] sm:$0xff]
    %v337 = vld [vmem:[#allocation9 + $0xd0] sm:$0xff]
    %v338 = vld [vmem:[#allocation9 + $0xd8] sm:$0xff]
    %v339 = vld [vmem:[#allocation9 + $0xe0] sm:$0xff]
    %v340 = vld [vmem:[#allocation9 + $0xe8] sm:$0xff]
    %v341 = vld [vmem:[#allocation9 + $0xf0] sm:$0xff]
    %v342 = vld [vmem:[#allocation9 + $0xf8] sm:$0xff]
    %343 = vmatprep.subr.mxu0 %v312
    %344 = vmatpush1.msra.mxu0 %v311
    %345 = vmatprep.subr.mxu0 %v314
    %346 = vmatpush1.msra.mxu0 %v313
    %347 = vmatprep.subr.mxu0 %v316
    %348 = vmatpush1.msra.mxu0 %v315
    %349 = vmatprep.subr.mxu0 %v318
    %350 = vmatpush1.msra.mxu0 %v317
    %351 = vmatprep.subr.mxu0 %v320
    %352 = vmatpush1.msra.mxu0 %v319
    %353 = vmatprep.subr.mxu0 %v322
    %354 = vmatpush1.msra.mxu0 %v321
    %355 = vmatprep.subr.mxu0 %v324
    %356 = vmatpush1.msra.mxu0 %v323
    %357 = vmatprep.subr.mxu0 %v326
    %358 = vmatpush1.msra.mxu0 %v325
    %359 = vmatprep.subr.mxu0 %v328
    %360 = vmatpush1.msra.mxu0 %v327
    %361 = vmatprep.subr.mxu0 %v330
    %362 = vmatpush1.msra.mxu0 %v329
    %363 = vmatprep.subr.mxu0 %v332
    %364 = vmatpush1.msra.mxu0 %v331
    %365 = vmatprep.subr.mxu0 %v334
    %366 = vmatpush1.msra.mxu0 %v333
    %367 = vmatprep.subr.mxu0 %v336
    %368 = vmatpush1.msra.mxu0 %v335
    %369 = vmatprep.subr.mxu0 %v338
    %370 = vmatpush1.msra.mxu0 %v337
    %371 = vmatprep.subr.mxu0 %v340
    %372 = vmatpush1.msra.mxu0 %v339
    %373 = vmatprep.subr.mxu0 %v342
    %374 = vmatpush1.msra.mxu0 %v341
    %375 = vmatprep.subr.mxu0 0.0
    %376 = vmatpush1.msra.mxu0 0.0
    %377 = vmatprep.subr.mxu0 0.0
    %378 = vmatpush1.msra.mxu0 0.0
    %379 = vmatprep.subr.mxu0 0.0
    %380 = vmatpush1.msra.mxu0 0.0
    %381 = vmatprep.subr.mxu0 0.0
    %382 = vmatpush1.msra.mxu0 0.0
    %383 = vmatprep.subr.mxu0 0.0
    %384 = vmatpush1.msra.mxu0 0.0
    %385 = vmatprep.subr.mxu0 0.0
    %386 = vmatpush1.msra.mxu0 0.0
    %387 = vmatprep.subr.mxu0 0.0
    %388 = vmatpush1.msra.mxu0 0.0
    %389 = vmatprep.subr.mxu0 0.0
    %390 = vmatpush1.msra.mxu0 0.0
    %391 = vmatprep.subr.mxu0 0.0
    %392 = vmatpush1.msra.mxu0 0.0
    %393 = vmatprep.subr.mxu0 0.0
    %394 = vmatpush1.msra.mxu0 0.0
    %395 = vmatprep.subr.mxu0 0.0
    %396 = vmatpush1.msra.mxu0 0.0
    %397 = vmatprep.subr.mxu0 0.0
    %398 = vmatpush1.msra.mxu0 0.0
    %399 = vmatprep.subr.mxu0 0.0
    %400 = vmatpush1.msra.mxu0 0.0
    %401 = vmatprep.subr.mxu0 0.0
    %402 = vmatpush1.msra.mxu0 0.0
    %403 = vmatprep.subr.mxu0 0.0
    %404 = vmatpush1.msra.mxu0 0.0
    %405 = vmatprep.subr.mxu0 0.0
    %406 = vmatpush1.msra.mxu0 0.0
    %407 = vmatprep.mubr.f32.mxu0 0.0
    %408 = vmatmul.mubr.f32.gmra.mrb[0].mxu0 %v120
    %v409 = vpop.f32.mrb[0].mxu0
    %v410 = vadd.f32 %v237, %v409
    %v411 = vpop.f32.mrb[0].mxu0
    %v412 = vadd.f32 %v239, %v411
    %413 = vdwg.mxu0
    %v414 = vld [vmem:[%s6] sm:$0x3]
    %v416 = vlaneseq
    %v417 = vshrl.u32 %v416, 7
    %v418 = vsub.s32 0, %v417
    %v419 = vrot.slane %v414, %v418
    %v420 = vlaneseq
    %v421 = vshrl.u32 %v420, 7
    %v422 = vsub.s32 1, %v421
    %v423 = vrot.slane %v414, %v422
    %v426 = vadd.f32 %v410, %v419
    %v427 = vadd.f32 %v412, %v423
    %v428 = vxor.u32 %v426, 2147483648
    %v429 = vxor.u32 %v427, 2147483648
    %v430 = vmul.f32 %v428, 1.442695
    %v431 = vpow.pop %v430
    %v432 = vmul.f32 %v429, 1.442695
    %v433 = vpow.pop %v432
    %v434 = vadd.f32 %v431, 1.0
    %v435 = vadd.f32 %v433, 1.0
    %v436 = vrcp.pop %v434
    %v437 = vmul.f32 1.0, %v436
    %v438 = vrcp.pop %v435
    %v439 = vmul.f32 1.0, %v438
    %v440 = vmul.f32 %v439, %v120
    %v441 = vld [vmem:[#allocation11] sm:$0xff]
    %v442 = vld [vmem:[#allocation11 + $0x8] sm:$0xff]
    %v443 = vld [vmem:[#allocation11 + $0x10] sm:$0xff]
    %v444 = vld [vmem:[#allocation11 + $0x18] sm:$0xff]
    %v445 = vld [vmem:[#allocation11 + $0x20] sm:$0xff]
    %v446 = vld [vmem:[#allocation11 + $0x28] sm:$0xff]
    %v447 = vld [vmem:[#allocation11 + $0x30] sm:$0xff]
    %v448 = vld [vmem:[#allocation11 + $0x38] sm:$0xff]
    %v449 = vld [vmem:[#allocation11 + $0x40] sm:$0xff]
    %v450 = vld [vmem:[#allocation11 + $0x48] sm:$0xff]
    %v451 = vld [vmem:[#allocation11 + $0x50] sm:$0xff]
    %v452 = vld [vmem:[#allocation11 + $0x58] sm:$0xff]
    %v453 = vld [vmem:[#allocation11 + $0x60] sm:$0xff]
    %v454 = vld [vmem:[#allocation11 + $0x68] sm:$0xff]
    %v455 = vld [vmem:[#allocation11 + $0x70] sm:$0xff]
    %v456 = vld [vmem:[#allocation11 + $0x78] sm:$0xff]
    %457 = vmatprep.subr.mxu0 0.0
    %458 = vmatpush1.msra.mxu0 %v441
    %459 = vmatprep.subr.mxu0 0.0
    %460 = vmatpush1.msra.mxu0 %v442
    %461 = vmatprep.subr.mxu0 0.0
    %462 = vmatpush1.msra.mxu0 %v443
    %463 = vmatprep.subr.mxu0 0.0
    %464 = vmatpush1.msra.mxu0 %v444
    %465 = vmatprep.subr.mxu0 0.0
    %466 = vmatpush1.msra.mxu0 %v445
    %467 = vmatprep.subr.mxu0 0.0
    %468 = vmatpush1.msra.mxu0 %v446
    %469 = vmatprep.subr.mxu0 0.0
    %470 = vmatpush1.msra.mxu0 %v447
    %471 = vmatprep.subr.mxu0 0.0
    %472 = vmatpush1.msra.mxu0 %v448
    %473 = vmatprep.subr.mxu0 0.0
    %474 = vmatpush1.msra.mxu0 %v449
    %475 = vmatprep.subr.mxu0 0.0
    %476 = vmatpush1.msra.mxu0 %v450
    %477 = vmatprep.subr.mxu0 0.0
    %478 = vmatpush1.msra.mxu0 %v451
    %479 = vmatprep.subr.mxu0 0.0
    %480 = vmatpush1.msra.mxu0 %v452
    %481 = vmatprep.subr.mxu0 0.0
    %482 = vmatpush1.msra.mxu0 %v453
    %483 = vmatprep.subr.mxu0 0.0
    %484 = vmatpush1.msra.mxu0 %v454
    %485 = vmatprep.subr.mxu0 0.0
    %486 = vmatpush1.msra.mxu0 %v455
    %487 = vmatprep.subr.mxu0 0.0
    %488 = vmatpush1.msra.mxu0 %v456
    %489 = vmatprep.subr.mxu0 0.0
    %490 = vmatpush1.msra.mxu0 0.0
    %491 = vmatprep.subr.mxu0 0.0
    %492 = vmatpush1.msra.mxu0 0.0
    %493 = vmatprep.subr.mxu0 0.0
    %494 = vmatpush1.msra.mxu0 0.0
    %495 = vmatprep.subr.mxu0 0.0
    %496 = vmatpush1.msra.mxu0 0.0
    %497 = vmatprep.subr.mxu0 0.0
    %498 = vmatpush1.msra.mxu0 0.0
    %499 = vmatprep.subr.mxu0 0.0
    %500 = vmatpush1.msra.mxu0 0.0
    %501 = vmatprep.subr.mxu0 0.0
    %502 = vmatpush1.msra.mxu0 0.0
    %503 = vmatprep.subr.mxu0 0.0
    %504 = vmatpush1.msra.mxu0 0.0
    %505 = vmatprep.subr.mxu0 0.0
    %506 = vmatpush1.msra.mxu0 0.0
    %507 = vmatprep.subr.mxu0 0.0
    %508 = vmatpush1.msra.mxu0 0.0
    %509 = vmatprep.subr.mxu0 0.0
    %510 = vmatpush1.msra.mxu0 0.0
    %511 = vmatprep.subr.mxu0 0.0
    %512 = vmatpush1.msra.mxu0 0.0
    %513 = vmatprep.subr.mxu0 0.0
    %514 = vmatpush1.msra.mxu0 0.0
    %515 = vmatprep.subr.mxu0 0.0
    %516 = vmatpush1.msra.mxu0 0.0
    %517 = vmatprep.subr.mxu0 0.0
    %518 = vmatpush1.msra.mxu0 0.0
    %519 = vmatprep.subr.mxu0 0.0
    %520 = vmatpush1.msra.mxu0 0.0
    %521 = vmatprep.mubr.f32.mxu0 0.0
    %522 = vmatmul.mubr.f32.gmra.mrb[0].mxu0 %v440
    %v523 = vpop.f32.mrb[0].mxu0
    %v524 = vadd.f32 %v308, %v523
    %v525 = vpop.f32.mrb[0].mxu0
    %526 = vdwg.mxu0
    %v527 = vld [vmem:[%s7] sm:$0x1]
    %v529 = vlaneseq
    %v530 = vshrl.u32 %v529, 7
    %v531 = vsub.s32 0, %v530
    %v532 = vrot.slane %v527, %v531
    %v534 = vadd.f32 %v524, %v532
    %v535 = vtanh.pop %v534
    %v536 = vsub.f32 1.0, %v437
    %v537 = vmul.f32 %v536, %v120
    %v538 = vmul.f32 %v437, %v535
    %v539 = vadd.f32 %v537, %v538
    %v540 = vld [vmem:[#allocation12] sm:$0xff]
    %v541 = vld [vmem:[#allocation12 + $0x8] sm:$0xff]
    %v542 = vld [vmem:[#allocation12 + $0x10] sm:$0xff]
    %v543 = vld [vmem:[#allocation12 + $0x18] sm:$0xff]
    %v544 = vld [vmem:[#allocation12 + $0x20] sm:$0xff]
    %v545 = vld [vmem:[#allocation12 + $0x28] sm:$0xff]
    %v546 = vld [vmem:[#allocation12 + $0x30] sm:$0xff]
    %v547 = vld [vmem:[#allocation12 + $0x38] sm:$0xff]
    %v548 = vld [vmem:[#allocation12 + $0x40] sm:$0xff]
    %v549 = vld [vmem:[#allocation12 + $0x48] sm:$0xff]
    %v550 = vld [vmem:[#allocation12 + $0x50] sm:$0xff]
    %v551 = vld [vmem:[#allocation12 + $0x58] sm:$0xff]
    %v552 = vld [vmem:[#allocation12 + $0x60] sm:$0xff]
    %v553 = vld [vmem:[#allocation12 + $0x68] sm:$0xff]
    %v554 = vld [vmem:[#allocation12 + $0x70] sm:$0xff]
    %v555 = vld [vmem:[#allocation12 + $0x78] sm:$0xff]
    %v556 = vld [vmem:[%s8] sm:$0x1]
    %v558 = vlaneseq
    %v559 = vshrl.u32 %v558, 7
    %v560 = vsub.s32 0, %v559
    %v561 = vrot.slane %v556, %v560
    %563 = vmatprep.subr.mxu0 0.0
    %564 = vmatpush1.msra.mxu0 %v540
    %565 = vmatprep.subr.mxu0 0.0
    %566 = vmatpush1.msra.mxu0 %v541
    %567 = vmatprep.subr.mxu0 0.0
    %568 = vmatpush1.msra.mxu0 %v542
    %569 = vmatprep.subr.mxu0 0.0
    %570 = vmatpush1.msra.mxu0 %v543
    %571 = vmatprep.subr.mxu0 0.0
    %572 = vmatpush1.msra.mxu0 %v544
    %573 = vmatprep.subr.mxu0 0.0
    %574 = vmatpush1.msra.mxu0 %v545
    %575 = vmatprep.subr.mxu0 0.0
    %576 = vmatpush1.msra.mxu0 %v546
    %577 = vmatprep.subr.mxu0 0.0
    %578 = vmatpush1.msra.mxu0 %v547
    %579 = vmatprep.subr.mxu0 0.0
    %580 = vmatpush1.msra.mxu0 %v548
    %581 = vmatprep.subr.mxu0 0.0
    %582 = vmatpush1.msra.mxu0 %v549
    %583 = vmatprep.subr.mxu0 0.0
    %584 = vmatpush1.msra.mxu0 %v550
    %585 = vmatprep.subr.mxu0 0.0
    %586 = vmatpush1.msra.mxu0 %v551
    %587 = vmatprep.subr.mxu0 0.0
    %588 = vmatpush1.msra.mxu0 %v552
    %589 = vmatprep.subr.mxu0 0.0
    %590 = vmatpush1.msra.mxu0 %v553
    %591 = vmatprep.subr.mxu0 0.0
    %592 = vmatpush1.msra.mxu0 %v554
    %593 = vmatprep.subr.mxu0 0.0
    %594 = vmatpush1.msra.mxu0 %v555
    %595 = vmatprep.subr.mxu0 0.0
    %596 = vmatpush1.msra.mxu0 0.0
    %597 = vmatprep.subr.mxu0 0.0
    %598 = vmatpush1.msra.mxu0 0.0
    %599 = vmatprep.subr.mxu0 0.0
    %600 = vmatpush1.msra.mxu0 0.0
    %601 = vmatprep.subr.mxu0 0.0
    %602 = vmatpush1.msra.mxu0 0.0
    %603 = vmatprep.subr.mxu0 0.0
    %604 = vmatpush1.msra.mxu0 0.0
    %605 = vmatprep.subr.mxu0 0.0
    %606 = vmatpush1.msra.mxu0 0.0
    %607 = vmatprep.subr.mxu0 0.0
    %608 = vmatpush1.msra.mxu0 0.0
    %609 = vmatprep.subr.mxu0 0.0
    %610 = vmatpush1.msra.mxu0 0.0
    %611 = vmatprep.subr.mxu0 0.0
    %612 = vmatpush1.msra.mxu0 0.0
    %613 = vmatprep.subr.mxu0 0.0
    %614 = vmatpush1.msra.mxu0 0.0
    %615 = vmatprep.subr.mxu0 0.0
    %616 = vmatpush1.msra.mxu0 0.0
    %617 = vmatprep.subr.mxu0 0.0
    %618 = vmatpush1.msra.mxu0 0.0
    %619 = vmatprep.subr.mxu0 0.0
    %620 = vmatpush1.msra.mxu0 0.0
    %621 = vmatprep.subr.mxu0 0.0
    %622 = vmatpush1.msra.mxu0 0.0
    %623 = vmatprep.subr.mxu0 0.0
    %624 = vmatpush1.msra.mxu0 0.0
    %625 = vmatprep.subr.mxu0 0.0
    %626 = vmatpush1.msra.mxu0 0.0
    %627 = vmatprep.mubr.f32.mxu0 0.0
    %628 = vmatmul.mubr.f32.gmra.mrb[0].mxu0 %v539
    %v629 = vpop.f32.mrb[0].mxu0
    %v630 = vadd.f32 %v561, %v629
    %v631 = vpop.f32.mrb[0].mxu0
    %632 = vdwg.mxu0
    %633 = vst [vmem:[#allocation2] sm:$0xff] %v539
    %634 = vst [vmem:[#allocation14] sm:$0xff] %v539
    %635 = vst [vmem:[#allocation15] sm:$0xff] %v630
    // Predicated region
    $region66: #{tpu_custom_call.1} parent=1 // pred_check
      _
    $region67: #{tpu_custom_call.1} parent=1 // pred_check_branch
      %637 = sbr.rel (0) target = $region69
    $region68: #{tpu_custom_call.1} parent=1 // pred_region
      %s639 = ssub.s32 128, 128
      %640 = vsyncadd [#allocation5], %s639
      %s642 = sshll.u32 [#allocation14], 4
      %s643 = int_to_ptr.vmem [resolvable:$true] %s642
      %645 = dma.vmem_to_hbm [thread:$0]  %s643, 128, %s9, [#allocation5]
    $region69: #{tpu_custom_call.1} parent=1 // pred_fallthru
      _
    // Predicated region
    $region70: #{tpu_custom_call.1} parent=1 // pred_check
      _
    $region71: #{tpu_custom_call.1} parent=1 // pred_check_branch
      %647 = sbr.rel (0) target = $region73
    $region72: #{tpu_custom_call.1} parent=1 // pred_region
      %s649 = ssub.s32 128, 128
      %650 = vsyncadd [#allocation16], %s649
      %s652 = sshll.u32 [#allocation15], 4
      %s653 = int_to_ptr.vmem [resolvable:$true] %s652
      %655 = dma.vmem_to_hbm [thread:$0]  %s653, 128, %s10, [#allocation16]
    $region73: #{tpu_custom_call.1} parent=1 // pred_fallthru
      _
    // Predicated region
    $region74: #{tpu_custom_call.1} parent=1 // pred_check
      _
    $region75: #{tpu_custom_call.1} parent=1 // pred_check_branch
      %657 = sbr.rel (0) target = $region77
    $region76: #{tpu_custom_call.1} parent=1 // pred_region
      %658 = dma.done [#allocation5], 128
    $region77: #{tpu_custom_call.1} parent=1 // pred_fallthru
      _
    // Predicated region
    $region78: #{tpu_custom_call.1} parent=1 // pred_check
      _
    $region79: #{tpu_custom_call.1} parent=1 // pred_check_branch
      %660 = sbr.rel (0) target = $region81
    $region80: #{tpu_custom_call.1} parent=1 // pred_region
      %661 = dma.done [#allocation16], 128
    $region81: #{tpu_custom_call.1} parent=1 // pred_fallthru
      _
    %662 = vsyncpa [#allocation4], 1
    %663 = vsyncpa [#allocation7], 1
    %664 = vsyncpa [#allocation10], 1
    %665 = vsyncpa [#allocation13], 1
    %666 = vsyncpa [#allocation5], 1
    %667 = vsyncpa [#allocation16], 1

</llo_original>
